<compile_context>
chip_gen: v6e
topology: v6e:2x2x1
jax: 0.10.0
libtpu: 0.0.40
codegen_flags: <defaults>
</compile_context>

<pallas_src>
import jax
import jax.numpy as jnp
from jax.experimental import pallas as pl
from jax.experimental.pallas import tpu as pltpu


def _tpu_config():
    """Per-generation (vmem_budget_bytes, vmem_limit_bytes, use_core_parallel)."""
    try:
        kind = jax.devices()[0].device_kind.lower()
    except Exception:
        kind = ""
    if "v7" in kind:
        # v7x: 64 MiB physical VMEM per TC (32 MiB scoped default), 2 TCs/chip.
        return 24 * 1024 * 1024, 32 * 1024 * 1024, True
    # v5e / v6e: 128 MiB physical VMEM -> raise both budget and scoped limit.
    return 64 * 1024 * 1024, 100 * 1024 * 1024, False


def _scale_kernel(log_scale_ref, out_ref):
    # log_scale_ref : (1, size) f32 param row, resident across grid steps
    #                 (constant index_map).
    # out_ref       : (tile_b, size) output tile.
    # exp runs on the EUP (its own bundle slot) and is recomputed per step;
    # the kernel is HBM-store-bound so this is hidden under the output DMA.
    scale_row = jnp.exp(log_scale_ref[...])
    out_ref[...] = jnp.broadcast_to(scale_row, out_ref.shape).astype(out_ref.dtype)


def stochastic_module_forward(inputs, loc_param, log_scale_param, *,
                              out_dtype=jnp.float32, use_pallas=None,
                              tile_rows=None):
    """Returns (loc, scale) of shape (batch, size) — the Normal's parameters.

    `inputs` is only used for its leading (batch) dimension, exactly like the
    PyTorch forward (`inputs.detach().size(0)`).
    """
    batch = inputs.shape[0]
    size = loc_param.shape[0]

    # loc needs no compute: return a lazy broadcast (fusable, no HBM writeback).
    loc = jnp.broadcast_to(loc_param.astype(out_dtype)[None, :], (batch, size))

    # Small shapes: a pallas_call boundary is pure fixed overhead; XLA's fused
    # broadcast+exp is strictly faster (and may avoid materialization entirely).
    if use_pallas is None:
        use_pallas = batch * size >= (1 << 20)
    if not use_pallas:
        scale = jnp.broadcast_to(
            jnp.exp(log_scale_param.astype(jnp.float32)).astype(out_dtype)[None, :],
            (batch, size))
        return loc, scale

    budget, vmem_limit, core_parallel = _tpu_config()
    itemsize = jnp.dtype(out_dtype).itemsize
    sublane = max(8, 32 // itemsize)          # f32 -> 8, bf16 -> 16, 1-byte -> 32

    if tile_rows is not None:
        tile_b = int(tile_rows)
    else:
        # Double-buffered output tile is the only sizeable VMEM consumer.
        rows_fit = budget // (2 * size * itemsize)
        tile_b = max(sublane, min(8192, (rows_fit // sublane) * sublane))
        if batch <= tile_b:
            tile_b = batch                    # full-dim block is always legal
    # Legality: tile_b must be a sublane-tile multiple OR the full batch dim.
    if tile_b != batch and tile_b % sublane != 0:
        tile_b = max(sublane, (tile_b // sublane) * sublane)

    grid = (pl.cdiv(batch, tile_b),)
    log_scale_2d = log_scale_param.astype(jnp.float32).reshape(1, size)

    def _launch(semantics):
        return pl.pallas_call(
            _scale_kernel,
            out_shape=jax.ShapeDtypeStruct((batch, size), out_dtype),
            grid=grid,
            in_specs=[
                # Constant index_map -> param row stays resident across steps.
                pl.BlockSpec((1, size), lambda i: (0, 0)),
            ],
            out_specs=pl.BlockSpec((tile_b, size), lambda i: (i, 0)),
            compiler_params=pltpu.CompilerParams(
                dimension_semantics=semantics,
                vmem_limit_bytes=vmem_limit,
            ),
        )(log_scale_2d)

    if core_parallel and grid[0] > 1:
        # v7x: actually split grid steps across the two TensorCores.
        try:
            scale = _launch((pltpu.CORE_PARALLEL,))
        except Exception:
            scale = _launch((pltpu.PARALLEL,))
    else:
        scale = _launch((pltpu.PARALLEL,))

    # TODO(synk): returning a Distribution *object* (torch.distributions.Normal)
    # has no Pallas equivalent; we return its (loc, scale) parameterization.
    return loc, scale


if __name__ == "__main__":
    key = jax.random.PRNGKey(0)
    k_in, k_loc, k_scale = jax.random.split(key, 3)

    batch = 2
    size = 32

    # The module's forward only consumes inputs.shape[0]; make a small input.
    inputs = jax.random.normal(k_in, (batch, size), dtype=jnp.float32)

    # Parameters of the Normal (module init is zeros; use random values here to
    # exercise exp + broadcast non-trivially — forward semantics are identical).
    loc_param = jax.random.normal(k_loc, (size,), dtype=jnp.float32)
    log_scale_param = 0.1 * jax.random.normal(k_scale, (size,), dtype=jnp.float32)

    # Pure-JAX reference (matches the PyTorch module exactly).
    ref_loc = jnp.broadcast_to(loc_param[None, :], (batch, size))
    ref_scale = jnp.broadcast_to(jnp.exp(log_scale_param)[None, :], (batch, size))

    # Force the Pallas path so the kernel itself is exercised at this small shape.
    loc, scale = stochastic_module_forward(
        inputs, loc_param, log_scale_param, use_pallas=True)
    loc = jax.block_until_ready(loc)
    scale = jax.block_until_ready(scale)
    assert loc.shape == (batch, size) and scale.shape == (batch, size)
    assert jnp.allclose(loc, ref_loc, atol=1e-6, rtol=1e-6)
    assert jnp.allclose(scale, ref_scale, atol=1e-6, rtol=1e-6)

    # Zero-init case (module default): loc = 0, scale = 1.
    z_loc, z_scale = stochastic_module_forward(
        inputs, jnp.zeros((size,), jnp.float32), jnp.zeros((size,), jnp.float32),
        use_pallas=True)
    jax.block_until_ready((z_loc, z_scale))
    assert jnp.allclose(z_loc, jnp.zeros((batch, size)))
    assert jnp.allclose(z_scale, jnp.ones((batch, size)))

    # Multi-step grid, f32: batch=24, tile_rows=8 -> grid=(3,).
    b2, s2 = 24, 32
    in2 = jnp.zeros((b2, s2), jnp.float32)
    lp2 = jax.random.normal(jax.random.PRNGKey(1), (s2,), dtype=jnp.float32)
    sp2 = 0.1 * jax.random.normal(jax.random.PRNGKey(2), (s2,), dtype=jnp.float32)
    l2, sc2 = stochastic_module_forward(in2, lp2, sp2, use_pallas=True, tile_rows=8)
    jax.block_until_ready((l2, sc2))
    assert jnp.allclose(l2, jnp.broadcast_to(lp2[None, :], (b2, s2)), atol=1e-6)
    assert jnp.allclose(sc2, jnp.broadcast_to(jnp.exp(sp2)[None, :], (b2, s2)),
                        atol=1e-6, rtol=1e-6)

    # bf16 output path (halved write traffic), multi-step grid with the bf16
    # sublane tile (16): batch=64, tile_rows=16 -> grid=(4,).
    b3, s3 = 64, 256
    in3 = jnp.zeros((b3, s3), jnp.float32)
    lp3 = jax.random.normal(jax.random.PRNGKey(3), (s3,), dtype=jnp.float32)
    sp3 = 0.1 * jax.random.normal(jax.random.PRNGKey(4), (s3,), dtype=jnp.float32)
    l3, sc3 = stochastic_module_forward(in3, lp3, sp3, out_dtype=jnp.bfloat16,
                                        use_pallas=True, tile_rows=16)
    jax.block_until_ready((l3, sc3))
    assert sc3.dtype == jnp.bfloat16
    assert jnp.allclose(sc3.astype(jnp.float32),
                        jnp.broadcast_to(jnp.exp(sp3)[None, :], (b3, s3)),
                        atol=1e-2, rtol=1e-2)

    print("KERNEL_OK")
</pallas_src>

<mosaic_0001>
module attributes {stable_mosaic.version = 11 : i64} {
  func.func @_scale_kernel(%arg0: i32, %arg1: memref<1x32xf32, #tpu.memory_space<vmem>>, %arg2: memref<2x32xf32, #tpu.memory_space<vmem>>) attributes {dimension_semantics = [#tpu.dimension_semantics<parallel>], iteration_bounds = array<i64: 1>, scalar_prefetch = 0 : i64, scratch_operands = 0 : i64, tpu.core_type = #tpu.core_type<tc>, window_params = [{pipeline_mode = #tpu.pipeline_mode<synchronous>, transform_indices = @transform_0, window_bounds = array<i64: 1, 32>}, {transform_indices = @transform_1, window_bounds = array<i64: 2, 32>}]} {
    %c0 = arith.constant 0 : index
    %c0_0 = arith.constant 0 : index
    %0 = vector.load %arg1[%c0, %c0_0] : memref<1x32xf32, #tpu.memory_space<vmem>>, vector<1x32xf32>
    %1 = math.exp %0 : vector<1x32xf32>
    %2 = vector.shape_cast %1 : vector<1x32xf32> to vector<1x32xf32>
    %3 = vector.broadcast %2 : vector<1x32xf32> to vector<2x32xf32>
    %c0_1 = arith.constant 0 : index
    %c0_2 = arith.constant 0 : index
    %4 = vector.load %arg2[%c0_1, %c0_2] : memref<2x32xf32, #tpu.memory_space<vmem>>, vector<2x32xf32>
    tpu.vector_store %arg2[%c0_1, %c0_2], %3 {strides = array<i32>} : memref<2x32xf32, #tpu.memory_space<vmem>>, vector<2x32xf32>,
    return
  }
  func.func @transform_0(%arg0: i32) -> (i32, i32) {
    %c0_i32 = arith.constant 0 : i32
    %c0_i32_0 = arith.constant 0 : i32
    %c0_i32_1 = arith.constant 0 : i32
    return %c0_i32, %c0_i32_0 : i32, i32
  }
  func.func @transform_1(%arg0: i32) -> (i32, i32) {
    %c0_i32 = arith.constant 0 : i32
    %c0_i32_0 = arith.constant 0 : i32
    return %arg0, %c0_i32 : i32, i32
  }
}

</mosaic_0001>

<llo_original>
// kernel: tpu_custom_call.1
$region0: #{tpu_custom_call.1}
  #allocation0 [shape = 'u32[]', space=smem, size = 0x4, offset = 0x4, fixed_abs, tag = 'smem constant byte address 0x4 - core index']
  #allocation1 [shape = 'u32[144,128]{1,0:T(1,128)}', space=vmem, size = 0x12000, scoped, tag = 'internal scratch']
  %s0 = inlined_call_operand.hbm [shape: f32[1,32], index: 0, kind: input, shape index: {}]
  %s1 = inlined_call_operand.hbm [shape: f32[2,32], index: 1, kind: output, shape index: {}]
  %s2 = sld [smem:[#allocation0]]
  $region18: #{tpu_custom_call.1} parent=0
    _
  %s4 = ssub.s32 1, %s2
  %s5 = scalar_select 0, %s4, %s2
  $region1: #{tpu_custom_call.1} parent=0
    #allocation2 [shape = 'u8[512]{0}', space=vmem, size = 0x400, scoped, tag = 'input window, operand 0, single buffered']
    #allocation3 [shape = 's32[1]{0}', space=sflag, size = 0x4, scoped, tag = 'scoped memory for tpu_custom_call.1']
    #allocation4 [shape = 's32[1]{0}', space=sflag, size = 0x4, scoped, tag = 'scoped memory for tpu_custom_call.1']
    #allocation5 [shape = 'u8[1024]{0}', space=vmem, size = 0x400, scoped, tag = 'output window, operand 0, single buffered']
    %6 = vsyncpa [#allocation3], 0
    %7 = vsyncpa [#allocation4], 0
    // Predicated region
    $region2: #{tpu_custom_call.1} parent=1 // pred_check
      _
    $region3: #{tpu_custom_call.1} parent=1 // pred_check_branch
      %9 = sbr.rel (0) target = $region5
    $region4: #{tpu_custom_call.1} parent=1 // pred_region
      %s11 = ssub.s32 16, 16
      %12 = vsyncadd [#allocation3], %s11
      %s14 = sshll.u32 [#allocation2], 4
      %s15 = int_to_ptr.vmem [resolvable:$true] %s14
      %17 = dma.hbm_to_vmem [thread:$0]  %s0, 16, %s15, [#allocation3]
    $region5: #{tpu_custom_call.1} parent=1 // pred_fallthru
      _
    // Predicated region
    $region6: #{tpu_custom_call.1} parent=1 // pred_check
      _
    $region7: #{tpu_custom_call.1} parent=1 // pred_check_branch
      %19 = sbr.rel (0) target = $region9
    $region8: #{tpu_custom_call.1} parent=1 // pred_region
      %20 = dma.done [#allocation3], 16
    $region9: #{tpu_custom_call.1} parent=1 // pred_fallthru
      _
    %v21 = vld [vmem:[#allocation2] sm:$0x1]
    %v22 = vmul.f32 %v21, 1.442695
    %v23 = vpow.pop %v22
    %v25 = vlaneseq
    %v26 = vshrl.u32 %v25, 7
    %v27 = vsub.s32 0, %v26
    %v28 = vrot.slane %v23, %v27
    %vm30 = vcmask 254976
    %31 = vst.msk [vmem:[#allocation5] sm:$0x3] %vm30, %v28
    // Predicated region
    $region10: #{tpu_custom_call.1} parent=1 // pred_check
      _
    $region11: #{tpu_custom_call.1} parent=1 // pred_check_branch
      %33 = sbr.rel (0) target = $region13
    $region12: #{tpu_custom_call.1} parent=1 // pred_region
      %s35 = ssub.s32 32, 32
      %36 = vsyncadd [#allocation4], %s35
      %s38 = sshll.u32 [#allocation5], 4
      %s39 = int_to_ptr.vmem [resolvable:$true] %s38
      %41 = dma.vmem_to_hbm [thread:$0]  %s39, 32, %s1, [#allocation4]
    $region13: #{tpu_custom_call.1} parent=1 // pred_fallthru
      _
    // Predicated region
    $region14: #{tpu_custom_call.1} parent=1 // pred_check
      _
    $region15: #{tpu_custom_call.1} parent=1 // pred_check_branch
      %43 = sbr.rel (0) target = $region17
    $region16: #{tpu_custom_call.1} parent=1 // pred_region
      %44 = dma.done [#allocation4], 32
    $region17: #{tpu_custom_call.1} parent=1 // pred_fallthru
      _
    %45 = vsyncpa [#allocation3], 1
    %46 = vsyncpa [#allocation4], 1

</llo_original>
